<compile_context>
chip_gen: v7x
topology: tpu7x:2x2x1
jax: 0.10.0
libtpu: 0.0.40
codegen_flags: <defaults>
</compile_context>

<pallas_src>
import functools

import jax
import jax.numpy as jnp
from jax.experimental import pallas as pl
from jax.experimental.pallas import tpu as pltpu


def _repr_net_kernel(*refs, level_ks, num_levels):
    """refs = [x_ref per level] + [pool-matrix ref per level with k > 1] + [out_ref]."""
    x_refs = refs[:num_levels]
    n_pw = sum(1 for k in level_ks if k > 1)
    pw_refs = refs[num_levels:num_levels + n_pw]
    out_ref = refs[num_levels + n_pw]

    acc = jnp.zeros(out_ref.shape, jnp.float32)  # (tile_n, W_out)
    pw_idx = 0
    for lvl in range(num_levels):
        k = level_ks[lvl]
        x = x_refs[lvl][...].astype(jnp.float32)      # (tile_n, k, W_lvl)
        hsum = jnp.sum(x, axis=1)                     # sublane reduce -> (tile_n, W_lvl)
        if k == 1:
            # kernel size 1 -> identity pooling, just add.
            acc = acc + hsum
        else:
            # Pooling matrix carries the 1/k^2 averaging factor; MXU matmul.
            pw = pw_refs[pw_idx][...]                 # (W_lvl, W_out)
            pw_idx += 1
            acc = acc + jnp.dot(hsum, pw, preferred_element_type=jnp.float32)
    out_ref[...] = acc.astype(out_ref.dtype)


def repr_net_forward(xs, *, max_level, tile_n=512):
    """Pallas implementation of ReprNet.forward(list of feature maps)."""
    num_levels = len(xs)
    ks = tuple(2 ** (max_level - lvl - 1) for lvl in range(num_levels))

    B, C, H0, W0 = xs[0].shape
    H_out, W_out = H0 // ks[0], W0 // ks[0]
    out_dtype = jnp.result_type(*[x.dtype for x in xs])

    # Fused row axis: one output row per (b, c, h_out).
    N = B * C * H_out
    tile_n = min(tile_n, ((N + 7) // 8) * 8)          # multiple of 8 (sublane)
    N_pad = ((N + tile_n - 1) // tile_n) * tile_n

    reshaped = []
    pool_mats = []
    in_specs = []

    for lvl, x in enumerate(xs):
        k = ks[lvl]
        b, c, h, w = x.shape
        assert (b, c) == (B, C), "all levels must share batch/channel dims"
        assert h // k == H_out and w // k == W_out, "pooled spatial sizes must match"
        # (B, C, H_out*k, W) -> (B*C*H_out, k, W): the k H-rows of each pooling
        # window become axis 1 (row-major reshape, no data movement semantics).
        xr = x.reshape(B * C * H_out, k, w)
        if N_pad != N:
            xr = jnp.pad(xr, ((0, N_pad - N), (0, 0), (0, 0)))
        reshaped.append(xr)
        in_specs.append(pl.BlockSpec((tile_n, k, w), lambda n: (n, 0, 0)))

    for lvl, x in enumerate(xs):
        k = ks[lvl]
        w = x.shape[3]
        if k > 1:
            # (W_lvl, W_out) selection matrix scaled by 1/k^2 (folds the average).
            src = jnp.arange(w, dtype=jnp.int32) // k
            dst = jnp.arange(W_out, dtype=jnp.int32)
            pw = (src[:, None] == dst[None, :]).astype(jnp.float32) * (1.0 / (k * k))
            pool_mats.append(pw)
            # Constant block index -> DMA'd once, stays resident across grid steps.
            in_specs.append(pl.BlockSpec((w, W_out), lambda n: (0, 0)))

    kernel = functools.partial(
        _repr_net_kernel, level_ks=ks, num_levels=num_levels
    )

    out = pl.pallas_call(
        kernel,
        out_shape=jax.ShapeDtypeStruct((N_pad, W_out), out_dtype),
        grid_spec=pltpu.PrefetchScalarGridSpec(
            num_scalar_prefetch=0,
            grid=(N_pad // tile_n,),
            in_specs=in_specs,
            out_specs=pl.BlockSpec((tile_n, W_out), lambda n: (n, 0)),
        ),
        compiler_params=pltpu.CompilerParams(
            dimension_semantics=("parallel",),
        ),
    )(*reshaped, *pool_mats)

    return out[:N].reshape(B, C, H_out, W_out)


# ----------------------------- reference ------------------------------------


def _ref_avgpool(x, k):
    B, C, H, W = x.shape
    return x.reshape(B, C, H // k, k, W // k, k).mean(axis=(3, 5))


def _reference(xs, max_level):
    outs = [
        _ref_avgpool(x, 2 ** (max_level - lvl - 1)) for lvl, x in enumerate(xs)
    ]
    return sum(outs)


if __name__ == "__main__":
    # Small shapes consistent with the module: num_levels=3, max_level=3.
    # Pool kernels per level: 4, 2, 1 -> all levels pool to (4, 4) and are summed.
    B, C = 2, 4
    num_levels, max_level = 3, 3
    key = jax.random.PRNGKey(0)
    keys = jax.random.split(key, num_levels)
    spatial = [16, 8, 4]
    xs = [
        jax.random.normal(keys[i], (B, C, spatial[i], spatial[i]), dtype=jnp.float32)
        for i in range(num_levels)
    ]

    out = repr_net_forward(xs, max_level=max_level)
    out = jax.block_until_ready(out)

    ref = _reference(xs, max_level)
    assert out.shape == ref.shape, (out.shape, ref.shape)
    assert jnp.allclose(out, ref, rtol=1e-5, atol=1e-5), (
        float(jnp.max(jnp.abs(out - ref)))
    )

    print("KERNEL_OK")
</pallas_src>

<mosaic_0001>
module attributes {stable_mosaic.version = 11 : i64} {
  func.func @_repr_net_kernel(%arg0: i32, %arg1: memref<32x4x16xf32, #tpu.memory_space<vmem>>, %arg2: memref<32x2x8xf32, #tpu.memory_space<vmem>>, %arg3: memref<32x1x4xf32, #tpu.memory_space<vmem>>, %arg4: memref<16x4xf32, #tpu.memory_space<vmem>>, %arg5: memref<8x4xf32, #tpu.memory_space<vmem>>, %arg6: memref<32x4xf32, #tpu.memory_space<vmem>>) attributes {dimension_semantics = [#tpu.dimension_semantics<parallel>], iteration_bounds = array<i64: 1>, scalar_prefetch = 0 : i64, scratch_operands = 0 : i64, tpu.core_type = #tpu.core_type<tc>, window_params = [{transform_indices = @transform_0, window_bounds = array<i64: 32, 4, 16>}, {transform_indices = @transform_1, window_bounds = array<i64: 32, 2, 8>}, {transform_indices = @transform_2, window_bounds = array<i64: 32, 1, 4>}, {pipeline_mode = #tpu.pipeline_mode<synchronous>, transform_indices = @transform_3, window_bounds = array<i64: 16, 4>}, {pipeline_mode = #tpu.pipeline_mode<synchronous>, transform_indices = @transform_4, window_bounds = array<i64: 8, 4>}, {transform_indices = @transform_5, window_bounds = array<i64: 32, 4>}]} {
    %cst = arith.constant 0.000000e+00 : f32
    %0 = vector.broadcast %cst : f32 to vector<32x4xf32>
    %c0 = arith.constant 0 : index
    %c0_0 = arith.constant 0 : index
    %c0_1 = arith.constant 0 : index
    %1 = vector.load %arg1[%c0, %c0_0, %c0_1] : memref<32x4x16xf32, #tpu.memory_space<vmem>>, vector<32x4x16xf32>
    %cst_2 = arith.constant dense<0.000000e+00> : vector<32x16xf32>
    %2 = vector.multi_reduction <add>, %1, %cst_2 [1] : vector<32x4x16xf32> to vector<32x16xf32>
    %c0_3 = arith.constant 0 : index
    %c0_4 = arith.constant 0 : index
    %3 = vector.load %arg4[%c0_3, %c0_4] : memref<16x4xf32, #tpu.memory_space<vmem>>, vector<16x4xf32>
    %cst_5 = arith.constant dense<0.000000e+00> : vector<32x4xf32>
    %4 = tpu.matmul %2, %3, %cst_5 {dimension_numbers = #tpu.dot_dimension_numbers<[1], [0], [0], [1], [0, 0, 1, 1], [], []>} : vector<32x16xf32>, vector<16x4xf32>, vector<32x4xf32> -> vector<32x4xf32>
    %5 = arith.addf %0, %4 : vector<32x4xf32>
    %c0_6 = arith.constant 0 : index
    %c0_7 = arith.constant 0 : index
    %c0_8 = arith.constant 0 : index
    %6 = vector.load %arg2[%c0_6, %c0_7, %c0_8] : memref<32x2x8xf32, #tpu.memory_space<vmem>>, vector<32x2x8xf32>
    %cst_9 = arith.constant dense<0.000000e+00> : vector<32x8xf32>
    %7 = vector.multi_reduction <add>, %6, %cst_9 [1] : vector<32x2x8xf32> to vector<32x8xf32>
    %c0_10 = arith.constant 0 : index
    %c0_11 = arith.constant 0 : index
    %8 = vector.load %arg5[%c0_10, %c0_11] : memref<8x4xf32, #tpu.memory_space<vmem>>, vector<8x4xf32>
    %cst_12 = arith.constant dense<0.000000e+00> : vector<32x4xf32>
    %9 = tpu.matmul %7, %8, %cst_12 {dimension_numbers = #tpu.dot_dimension_numbers<[1], [0], [0], [1], [0, 0, 1, 1], [], []>} : vector<32x8xf32>, vector<8x4xf32>, vector<32x4xf32> -> vector<32x4xf32>
    %10 = arith.addf %5, %9 : vector<32x4xf32>
    %c0_13 = arith.constant 0 : index
    %c0_14 = arith.constant 0 : index
    %c0_15 = arith.constant 0 : index
    %11 = vector.load %arg3[%c0_13, %c0_14, %c0_15] : memref<32x1x4xf32, #tpu.memory_space<vmem>>, vector<32x1x4xf32>
    %cst_16 = arith.constant dense<0.000000e+00> : vector<32x4xf32>
    %12 = vector.multi_reduction <add>, %11, %cst_16 [1] : vector<32x1x4xf32> to vector<32x4xf32>
    %13 = arith.addf %10, %12 : vector<32x4xf32>
    %c0_17 = arith.constant 0 : index
    %c0_18 = arith.constant 0 : index
    %14 = vector.load %arg6[%c0_17, %c0_18] : memref<32x4xf32, #tpu.memory_space<vmem>>, vector<32x4xf32>
    tpu.vector_store %arg6[%c0_17, %c0_18], %13 {strides = array<i32>} : memref<32x4xf32, #tpu.memory_space<vmem>>, vector<32x4xf32>,
    return
  }
  func.func @transform_0(%arg0: i32) -> (i32, i32, i32) {
    %c0_i32 = arith.constant 0 : i32
    %c0_i32_0 = arith.constant 0 : i32
    %c0_i32_1 = arith.constant 0 : i32
    return %arg0, %c0_i32, %c0_i32_0 : i32, i32, i32
  }
  func.func @transform_1(%arg0: i32) -> (i32, i32, i32) {
    %c0_i32 = arith.constant 0 : i32
    %c0_i32_0 = arith.constant 0 : i32
    %c0_i32_1 = arith.constant 0 : i32
    return %arg0, %c0_i32, %c0_i32_0 : i32, i32, i32
  }
  func.func @transform_2(%arg0: i32) -> (i32, i32, i32) {
    %c0_i32 = arith.constant 0 : i32
    %c0_i32_0 = arith.constant 0 : i32
    %c0_i32_1 = arith.constant 0 : i32
    return %arg0, %c0_i32, %c0_i32_0 : i32, i32, i32
  }
  func.func @transform_3(%arg0: i32) -> (i32, i32) {
    %c0_i32 = arith.constant 0 : i32
    %c0_i32_0 = arith.constant 0 : i32
    %c0_i32_1 = arith.constant 0 : i32
    return %c0_i32, %c0_i32_0 : i32, i32
  }
  func.func @transform_4(%arg0: i32) -> (i32, i32) {
    %c0_i32 = arith.constant 0 : i32
    %c0_i32_0 = arith.constant 0 : i32
    %c0_i32_1 = arith.constant 0 : i32
    return %c0_i32, %c0_i32_0 : i32, i32
  }
  func.func @transform_5(%arg0: i32) -> (i32, i32) {
    %c0_i32 = arith.constant 0 : i32
    %c0_i32_0 = arith.constant 0 : i32
    return %arg0, %c0_i32 : i32, i32
  }
}

</mosaic_0001>

<llo_original>
// kernel: tpu_custom_call.1
$region0: #{tpu_custom_call.1}
  #allocation0 [shape = 'u32[]', space=smem, size = 0x4, offset = 0x4, fixed_abs, tag = 'smem constant byte address 0x4 - core index']
  #allocation1 [shape = 'u32[144,128]{1,0:T(1,128)}', space=vmem, size = 0x12000, scoped, tag = 'internal scratch']
  %s0 = inlined_call_operand.vmem [shape: f32[32,4,16], index: 0, kind: input, shape index: {}]
  %s1 = inlined_call_operand.vmem [shape: f32[32,2,8], index: 1, kind: input, shape index: {}]
  %s2 = inlined_call_operand.vmem [shape: f32[32,1,4], index: 2, kind: input, shape index: {}]
  %s3 = inlined_call_operand.vmem [shape: f32[16,4], index: 3, kind: input, shape index: {}]
  %s4 = inlined_call_operand.vmem [shape: f32[8,4], index: 4, kind: input, shape index: {}]
  %s5 = inlined_call_operand.vmem [shape: f32[32,4], index: 5, kind: output, shape index: {}]
  %s6 = sld [smem:[#allocation0]]
  $region30: #{tpu_custom_call.1} parent=0
    _
  %s8 = ssub.s32 1, %s6
  %s9 = scalar_select 0, %s8, %s6
  // Predicated region
  $region2: #{tpu_custom_call.1} parent=0 // pred_check
    _
  $region3: #{tpu_custom_call.1} parent=0 // pred_check_branch
    %11 = sbr.rel (0) target = $region5
  $region4: #{tpu_custom_call.1} parent=0 // pred_region
    _
  $region5: #{tpu_custom_call.1} parent=0 // pred_fallthru
    _
  // Predicated region
  $region6: #{tpu_custom_call.1} parent=0 // pred_check
    _
  $region7: #{tpu_custom_call.1} parent=0 // pred_check_branch
    %13 = sbr.rel (0) target = $region9
  $region8: #{tpu_custom_call.1} parent=0 // pred_region
    _
  $region9: #{tpu_custom_call.1} parent=0 // pred_fallthru
    _
  // Predicated region
  $region10: #{tpu_custom_call.1} parent=0 // pred_check
    _
  $region11: #{tpu_custom_call.1} parent=0 // pred_check_branch
    %15 = sbr.rel (0) target = $region13
  $region12: #{tpu_custom_call.1} parent=0 // pred_region
    _
  $region13: #{tpu_custom_call.1} parent=0 // pred_fallthru
    _
  // Predicated region
  $region14: #{tpu_custom_call.1} parent=0 // pred_check
    _
  $region15: #{tpu_custom_call.1} parent=0 // pred_check_branch
    %17 = sbr.rel (0) target = $region17
  $region16: #{tpu_custom_call.1} parent=0 // pred_region
    _
  $region17: #{tpu_custom_call.1} parent=0 // pred_fallthru
    _
  // Predicated region
  $region18: #{tpu_custom_call.1} parent=0 // pred_check
    _
  $region19: #{tpu_custom_call.1} parent=0 // pred_check_branch
    %19 = sbr.rel (0) target = $region21
  $region20: #{tpu_custom_call.1} parent=0 // pred_region
    _
  $region21: #{tpu_custom_call.1} parent=0 // pred_fallthru
    _
  %v20 = vld [vmem:[%s0] sm:$0xf]
  %v21 = vld [vmem:[%s0 + $0x4] sm:$0xf]
  %v22 = vld [vmem:[%s0 + $0x8] sm:$0xf]
  %v23 = vld [vmem:[%s0 + $0xc] sm:$0xf]
  %v24 = vld [vmem:[%s0 + $0x10] sm:$0xf]
  %v25 = vld [vmem:[%s0 + $0x14] sm:$0xf]
  %v26 = vld [vmem:[%s0 + $0x18] sm:$0xf]
  %v27 = vld [vmem:[%s0 + $0x1c] sm:$0xf]
  %v28 = vld [vmem:[%s0 + $0x20] sm:$0xf]
  %v29 = vld [vmem:[%s0 + $0x24] sm:$0xf]
  %v30 = vld [vmem:[%s0 + $0x28] sm:$0xf]
  %v31 = vld [vmem:[%s0 + $0x2c] sm:$0xf]
  %v32 = vld [vmem:[%s0 + $0x30] sm:$0xf]
  %v33 = vld [vmem:[%s0 + $0x34] sm:$0xf]
  %v34 = vld [vmem:[%s0 + $0x38] sm:$0xf]
  %v35 = vld [vmem:[%s0 + $0x3c] sm:$0xf]
  %v36 = vld [vmem:[%s0 + $0x40] sm:$0xf]
  %v37 = vld [vmem:[%s0 + $0x44] sm:$0xf]
  %v38 = vld [vmem:[%s0 + $0x48] sm:$0xf]
  %v39 = vld [vmem:[%s0 + $0x4c] sm:$0xf]
  %v40 = vld [vmem:[%s0 + $0x50] sm:$0xf]
  %v41 = vld [vmem:[%s0 + $0x54] sm:$0xf]
  %v42 = vld [vmem:[%s0 + $0x58] sm:$0xf]
  %v43 = vld [vmem:[%s0 + $0x5c] sm:$0xf]
  %v44 = vld [vmem:[%s0 + $0x60] sm:$0xf]
  %v45 = vld [vmem:[%s0 + $0x64] sm:$0xf]
  %v46 = vld [vmem:[%s0 + $0x68] sm:$0xf]
  %v47 = vld [vmem:[%s0 + $0x6c] sm:$0xf]
  %v48 = vld [vmem:[%s0 + $0x70] sm:$0xf]
  %v49 = vld [vmem:[%s0 + $0x74] sm:$0xf]
  %v50 = vld [vmem:[%s0 + $0x78] sm:$0xf]
  %v51 = vld [vmem:[%s0 + $0x7c] sm:$0xf]
  %vm52 = vcmask 125952
  %v53 = vsel %vm52, %v20, 0.0
  %v54 = vrot.slane %v53, 4
  %v55 = vadd.f32 %v53, %v54
  %v56 = vrot.slane %v55, 2
  %v57 = vadd.f32 %v55, %v56
  %v58 = vrot.slane %v57, 1
  %v59 = vadd.f32 %v57, %v58
  %v60 = vsel %vm52, %v21, 0.0
  %v61 = vrot.slane %v60, 4
  %v62 = vadd.f32 %v60, %v61
  %v63 = vrot.slane %v62, 2
  %v64 = vadd.f32 %v62, %v63
  %v65 = vrot.slane %v64, 1
  %v66 = vadd.f32 %v64, %v65
  %v67 = vsel %vm52, %v22, 0.0
  %v68 = vrot.slane %v67, 4
  %v69 = vadd.f32 %v67, %v68
  %v70 = vrot.slane %v69, 2
  %v71 = vadd.f32 %v69, %v70
  %v72 = vrot.slane %v71, 1
  %v73 = vadd.f32 %v71, %v72
  %v74 = vsel %vm52, %v23, 0.0
  %v75 = vrot.slane %v74, 4
  %v76 = vadd.f32 %v74, %v75
  %v77 = vrot.slane %v76, 2
  %v78 = vadd.f32 %v76, %v77
  %v79 = vrot.slane %v78, 1
  %v80 = vadd.f32 %v78, %v79
  %v81 = vsel %vm52, %v24, 0.0
  %v82 = vrot.slane %v81, 4
  %v83 = vadd.f32 %v81, %v82
  %v84 = vrot.slane %v83, 2
  %v85 = vadd.f32 %v83, %v84
  %v86 = vrot.slane %v85, 1
  %v87 = vadd.f32 %v85, %v86
  %v88 = vsel %vm52, %v25, 0.0
  %v89 = vrot.slane %v88, 4
  %v90 = vadd.f32 %v88, %v89
  %v91 = vrot.slane %v90, 2
  %v92 = vadd.f32 %v90, %v91
  %v93 = vrot.slane %v92, 1
  %v94 = vadd.f32 %v92, %v93
  %v95 = vsel %vm52, %v26, 0.0
  %v96 = vrot.slane %v95, 4
  %v97 = vadd.f32 %v95, %v96
  %v98 = vrot.slane %v97, 2
  %v99 = vadd.f32 %v97, %v98
  %v100 = vrot.slane %v99, 1
  %v101 = vadd.f32 %v99, %v100
  %v102 = vsel %vm52, %v27, 0.0
  %v103 = vrot.slane %v102, 4
  %v104 = vadd.f32 %v102, %v103
  %v105 = vrot.slane %v104, 2
  %v106 = vadd.f32 %v104, %v105
  %v107 = vrot.slane %v106, 1
  %v108 = vadd.f32 %v106, %v107
  %v109 = vsel %vm52, %v28, 0.0
  %v110 = vrot.slane %v109, 4
  %v111 = vadd.f32 %v109, %v110
  %v112 = vrot.slane %v111, 2
  %v113 = vadd.f32 %v111, %v112
  %v114 = vrot.slane %v113, 1
  %v115 = vadd.f32 %v113, %v114
  %v116 = vsel %vm52, %v29, 0.0
  %v117 = vrot.slane %v116, 4
  %v118 = vadd.f32 %v116, %v117
  %v119 = vrot.slane %v118, 2
  %v120 = vadd.f32 %v118, %v119
  %v121 = vrot.slane %v120, 1
  %v122 = vadd.f32 %v120, %v121
  %v123 = vsel %vm52, %v30, 0.0
  %v124 = vrot.slane %v123, 4
  %v125 = vadd.f32 %v123, %v124
  %v126 = vrot.slane %v125, 2
  %v127 = vadd.f32 %v125, %v126
  %v128 = vrot.slane %v127, 1
  %v129 = vadd.f32 %v127, %v128
  %v130 = vsel %vm52, %v31, 0.0
  %v131 = vrot.slane %v130, 4
  %v132 = vadd.f32 %v130, %v131
  %v133 = vrot.slane %v132, 2
  %v134 = vadd.f32 %v132, %v133
  %v135 = vrot.slane %v134, 1
  %v136 = vadd.f32 %v134, %v135
  %v137 = vsel %vm52, %v32, 0.0
  %v138 = vrot.slane %v137, 4
  %v139 = vadd.f32 %v137, %v138
  %v140 = vrot.slane %v139, 2
  %v141 = vadd.f32 %v139, %v140
  %v142 = vrot.slane %v141, 1
  %v143 = vadd.f32 %v141, %v142
  %v144 = vsel %vm52, %v33, 0.0
  %v145 = vrot.slane %v144, 4
  %v146 = vadd.f32 %v144, %v145
  %v147 = vrot.slane %v146, 2
  %v148 = vadd.f32 %v146, %v147
  %v149 = vrot.slane %v148, 1
  %v150 = vadd.f32 %v148, %v149
  %v151 = vsel %vm52, %v34, 0.0
  %v152 = vrot.slane %v151, 4
  %v153 = vadd.f32 %v151, %v152
  %v154 = vrot.slane %v153, 2
  %v155 = vadd.f32 %v153, %v154
  %v156 = vrot.slane %v155, 1
  %v157 = vadd.f32 %v155, %v156
  %v158 = vsel %vm52, %v35, 0.0
  %v159 = vrot.slane %v158, 4
  %v160 = vadd.f32 %v158, %v159
  %v161 = vrot.slane %v160, 2
  %v162 = vadd.f32 %v160, %v161
  %v163 = vrot.slane %v162, 1
  %v164 = vadd.f32 %v162, %v163
  %v165 = vsel %vm52, %v36, 0.0
  %v166 = vrot.slane %v165, 4
  %v167 = vadd.f32 %v165, %v166
  %v168 = vrot.slane %v167, 2
  %v169 = vadd.f32 %v167, %v168
  %v170 = vrot.slane %v169, 1
  %v171 = vadd.f32 %v169, %v170
  %v172 = vsel %vm52, %v37, 0.0
  %v173 = vrot.slane %v172, 4
  %v174 = vadd.f32 %v172, %v173
  %v175 = vrot.slane %v174, 2
  %v176 = vadd.f32 %v174, %v175
  %v177 = vrot.slane %v176, 1
  %v178 = vadd.f32 %v176, %v177
  %v179 = vsel %vm52, %v38, 0.0
  %v180 = vrot.slane %v179, 4
  %v181 = vadd.f32 %v179, %v180
  %v182 = vrot.slane %v181, 2
  %v183 = vadd.f32 %v181, %v182
  %v184 = vrot.slane %v183, 1
  %v185 = vadd.f32 %v183, %v184
  %v186 = vsel %vm52, %v39, 0.0
  %v187 = vrot.slane %v186, 4
  %v188 = vadd.f32 %v186, %v187
  %v189 = vrot.slane %v188, 2
  %v190 = vadd.f32 %v188, %v189
  %v191 = vrot.slane %v190, 1
  %v192 = vadd.f32 %v190, %v191
  %v193 = vsel %vm52, %v40, 0.0
  %v194 = vrot.slane %v193, 4
  %v195 = vadd.f32 %v193, %v194
  %v196 = vrot.slane %v195, 2
  %v197 = vadd.f32 %v195, %v196
  %v198 = vrot.slane %v197, 1
  %v199 = vadd.f32 %v197, %v198
  %v200 = vsel %vm52, %v41, 0.0
  %v201 = vrot.slane %v200, 4
  %v202 = vadd.f32 %v200, %v201
  %v203 = vrot.slane %v202, 2
  %v204 = vadd.f32 %v202, %v203
  %v205 = vrot.slane %v204, 1
  %v206 = vadd.f32 %v204, %v205
  %v207 = vsel %vm52, %v42, 0.0
  %v208 = vrot.slane %v207, 4
  %v209 = vadd.f32 %v207, %v208
  %v210 = vrot.slane %v209, 2
  %v211 = vadd.f32 %v209, %v210
  %v212 = vrot.slane %v211, 1
  %v213 = vadd.f32 %v211, %v212
  %v214 = vsel %vm52, %v43, 0.0
  %v215 = vrot.slane %v214, 4
  %v216 = vadd.f32 %v214, %v215
  %v217 = vrot.slane %v216, 2
  %v218 = vadd.f32 %v216, %v217
  %v219 = vrot.slane %v218, 1
  %v220 = vadd.f32 %v218, %v219
  %v221 = vsel %vm52, %v44, 0.0
  %v222 = vrot.slane %v221, 4
  %v223 = vadd.f32 %v221, %v222
  %v224 = vrot.slane %v223, 2
  %v225 = vadd.f32 %v223, %v224
  %v226 = vrot.slane %v225, 1
  %v227 = vadd.f32 %v225, %v226
  %v228 = vsel %vm52, %v45, 0.0
  %v229 = vrot.slane %v228, 4
  %v230 = vadd.f32 %v228, %v229
  %v231 = vrot.slane %v230, 2
  %v232 = vadd.f32 %v230, %v231
  %v233 = vrot.slane %v232, 1
  %v234 = vadd.f32 %v232, %v233
  %v235 = vsel %vm52, %v46, 0.0
  %v236 = vrot.slane %v235, 4
  %v237 = vadd.f32 %v235, %v236
  %v238 = vrot.slane %v237, 2
  %v239 = vadd.f32 %v237, %v238
  %v240 = vrot.slane %v239, 1
  %v241 = vadd.f32 %v239, %v240
  %v242 = vsel %vm52, %v47, 0.0
  %v243 = vrot.slane %v242, 4
  %v244 = vadd.f32 %v242, %v243
  %v245 = vrot.slane %v244, 2
  %v246 = vadd.f32 %v244, %v245
  %v247 = vrot.slane %v246, 1
  %v248 = vadd.f32 %v246, %v247
  %v249 = vsel %vm52, %v48, 0.0
  %v250 = vrot.slane %v249, 4
  %v251 = vadd.f32 %v249, %v250
  %v252 = vrot.slane %v251, 2
  %v253 = vadd.f32 %v251, %v252
  %v254 = vrot.slane %v253, 1
  %v255 = vadd.f32 %v253, %v254
  %v256 = vsel %vm52, %v49, 0.0
  %v257 = vrot.slane %v256, 4
  %v258 = vadd.f32 %v256, %v257
  %v259 = vrot.slane %v258, 2
  %v260 = vadd.f32 %v258, %v259
  %v261 = vrot.slane %v260, 1
  %v262 = vadd.f32 %v260, %v261
  %v263 = vsel %vm52, %v50, 0.0
  %v264 = vrot.slane %v263, 4
  %v265 = vadd.f32 %v263, %v264
  %v266 = vrot.slane %v265, 2
  %v267 = vadd.f32 %v265, %v266
  %v268 = vrot.slane %v267, 1
  %v269 = vadd.f32 %v267, %v268
  %v270 = vsel %vm52, %v51, 0.0
  %v271 = vrot.slane %v270, 4
  %v272 = vadd.f32 %v270, %v271
  %v273 = vrot.slane %v272, 2
  %v274 = vadd.f32 %v272, %v273
  %v275 = vrot.slane %v274, 1
  %v276 = vadd.f32 %v274, %v275
  %v277 = vld [vmem:[%s3] sm:$0xff]
  %v278 = vld [vmem:[%s3 + $0x8] sm:$0xff]
  %v279 = vld [vmem:[%s1] sm:$0x3]
  %v280 = vld [vmem:[%s1 + $0x2] sm:$0x3]
  %v281 = vld [vmem:[%s1 + $0x4] sm:$0x3]
  %v282 = vld [vmem:[%s1 + $0x6] sm:$0x3]
  %v283 = vld [vmem:[%s1 + $0x8] sm:$0x3]
  %v284 = vld [vmem:[%s1 + $0xa] sm:$0x3]
  %v285 = vld [vmem:[%s1 + $0xc] sm:$0x3]
  %v286 = vld [vmem:[%s1 + $0xe] sm:$0x3]
  %v287 = vld [vmem:[%s1 + $0x10] sm:$0x3]
  %v288 = vld [vmem:[%s1 + $0x12] sm:$0x3]
  %v289 = vld [vmem:[%s1 + $0x14] sm:$0x3]
  %v290 = vld [vmem:[%s1 + $0x16] sm:$0x3]
  %v291 = vld [vmem:[%s1 + $0x18] sm:$0x3]
  %v292 = vld [vmem:[%s1 + $0x1a] sm:$0x3]
  %v293 = vld [vmem:[%s1 + $0x1c] sm:$0x3]
  %v294 = vld [vmem:[%s1 + $0x1e] sm:$0x3]
  %v295 = vld [vmem:[%s1 + $0x20] sm:$0x3]
  %v296 = vld [vmem:[%s1 + $0x22] sm:$0x3]
  %v297 = vld [vmem:[%s1 + $0x24] sm:$0x3]
  %v298 = vld [vmem:[%s1 + $0x26] sm:$0x3]
  %v299 = vld [vmem:[%s1 + $0x28] sm:$0x3]
  %v300 = vld [vmem:[%s1 + $0x2a] sm:$0x3]
  %v301 = vld [vmem:[%s1 + $0x2c] sm:$0x3]
  %v302 = vld [vmem:[%s1 + $0x2e] sm:$0x3]
  %v303 = vld [vmem:[%s1 + $0x30] sm:$0x3]
  %v304 = vld [vmem:[%s1 + $0x32] sm:$0x3]
  %v305 = vld [vmem:[%s1 + $0x34] sm:$0x3]
  %v306 = vld [vmem:[%s1 + $0x36] sm:$0x3]
  %v307 = vld [vmem:[%s1 + $0x38] sm:$0x3]
  %v308 = vld [vmem:[%s1 + $0x3a] sm:$0x3]
  %v309 = vld [vmem:[%s1 + $0x3c] sm:$0x3]
  %v310 = vld [vmem:[%s1 + $0x3e] sm:$0x3]
  %vm311 = vcmask 58368
  %v312 = vsel %vm311, %v279, 0.0
  %v313 = vrot.slane %v312, 4
  %v314 = vadd.f32 %v312, %v313
  %v315 = vrot.slane %v314, 2
  %v316 = vadd.f32 %v314, %v315
  %v317 = vrot.slane %v316, 1
  %v318 = vadd.f32 %v316, %v317
  %v319 = vsel %vm311, %v280, 0.0
  %v320 = vrot.slane %v319, 4
  %v321 = vadd.f32 %v319, %v320
  %v322 = vrot.slane %v321, 2
  %v323 = vadd.f32 %v321, %v322
  %v324 = vrot.slane %v323, 1
  %v325 = vadd.f32 %v323, %v324
  %v326 = vsel %vm311, %v281, 0.0
  %v327 = vrot.slane %v326, 4
  %v328 = vadd.f32 %v326, %v327
  %v329 = vrot.slane %v328, 2
  %v330 = vadd.f32 %v328, %v329
  %v331 = vrot.slane %v330, 1
  %v332 = vadd.f32 %v330, %v331
  %v333 = vsel %vm311, %v282, 0.0
  %v334 = vrot.slane %v333, 4
  %v335 = vadd.f32 %v333, %v334
  %v336 = vrot.slane %v335, 2
  %v337 = vadd.f32 %v335, %v336
  %v338 = vrot.slane %v337, 1
  %v339 = vadd.f32 %v337, %v338
  %v340 = vsel %vm311, %v283, 0.0
  %v341 = vrot.slane %v340, 4
  %v342 = vadd.f32 %v340, %v341
  %v343 = vrot.slane %v342, 2
  %v344 = vadd.f32 %v342, %v343
  %v345 = vrot.slane %v344, 1
  %v346 = vadd.f32 %v344, %v345
  %v347 = vsel %vm311, %v284, 0.0
  %v348 = vrot.slane %v347, 4
  %v349 = vadd.f32 %v347, %v348
  %v350 = vrot.slane %v349, 2
  %v351 = vadd.f32 %v349, %v350
  %v352 = vrot.slane %v351, 1
  %v353 = vadd.f32 %v351, %v352
  %v354 = vsel %vm311, %v285, 0.0
  %v355 = vrot.slane %v354, 4
  %v356 = vadd.f32 %v354, %v355
  %v357 = vrot.slane %v356, 2
  %v358 = vadd.f32 %v356, %v357
  %v359 = vrot.slane %v358, 1
  %v360 = vadd.f32 %v358, %v359
  %v361 = vsel %vm311, %v286, 0.0
  %v362 = vrot.slane %v361, 4
  %v363 = vadd.f32 %v361, %v362
  %v364 = vrot.slane %v363, 2
  %v365 = vadd.f32 %v363, %v364
  %v366 = vrot.slane %v365, 1
  %v367 = vadd.f32 %v365, %v366
  %v368 = vsel %vm311, %v287, 0.0
  %v369 = vrot.slane %v368, 4
  %v370 = vadd.f32 %v368, %v369
  %v371 = vrot.slane %v370, 2
  %v372 = vadd.f32 %v370, %v371
  %v373 = vrot.slane %v372, 1
  %v374 = vadd.f32 %v372, %v373
  %v375 = vsel %vm311, %v288, 0.0
  %v376 = vrot.slane %v375, 4
  %v377 = vadd.f32 %v375, %v376
  %v378 = vrot.slane %v377, 2
  %v379 = vadd.f32 %v377, %v378
  %v380 = vrot.slane %v379, 1
  %v381 = vadd.f32 %v379, %v380
  %v382 = vsel %vm311, %v289, 0.0
  %v383 = vrot.slane %v382, 4
  %v384 = vadd.f32 %v382, %v383
  %v385 = vrot.slane %v384, 2
  %v386 = vadd.f32 %v384, %v385
  %v387 = vrot.slane %v386, 1
  %v388 = vadd.f32 %v386, %v387
  %v389 = vsel %vm311, %v290, 0.0
  %v390 = vrot.slane %v389, 4
  %v391 = vadd.f32 %v389, %v390
  %v392 = vrot.slane %v391, 2
  %v393 = vadd.f32 %v391, %v392
  %v394 = vrot.slane %v393, 1
  %v395 = vadd.f32 %v393, %v394
  %v396 = vsel %vm311, %v291, 0.0
  %v397 = vrot.slane %v396, 4
  %v398 = vadd.f32 %v396, %v397
  %v399 = vrot.slane %v398, 2
  %v400 = vadd.f32 %v398, %v399
  %v401 = vrot.slane %v400, 1
  %v402 = vadd.f32 %v400, %v401
  %v403 = vsel %vm311, %v292, 0.0
  %v404 = vrot.slane %v403, 4
  %v405 = vadd.f32 %v403, %v404
  %v406 = vrot.slane %v405, 2
  %v407 = vadd.f32 %v405, %v406
  %v408 = vrot.slane %v407, 1
  %v409 = vadd.f32 %v407, %v408
  %v410 = vsel %vm311, %v293, 0.0
  %v411 = vrot.slane %v410, 4
  %v412 = vadd.f32 %v410, %v411
  %v413 = vrot.slane %v412, 2
  %v414 = vadd.f32 %v412, %v413
  %v415 = vrot.slane %v414, 1
  %v416 = vadd.f32 %v414, %v415
  %v417 = vsel %vm311, %v294, 0.0
  %v418 = vrot.slane %v417, 4
  %v419 = vadd.f32 %v417, %v418
  %v420 = vrot.slane %v419, 2
  %v421 = vadd.f32 %v419, %v420
  %v422 = vrot.slane %v421, 1
  %v423 = vadd.f32 %v421, %v422
  %v424 = vsel %vm311, %v295, 0.0
  %v425 = vrot.slane %v424, 4
  %v426 = vadd.f32 %v424, %v425
  %v427 = vrot.slane %v426, 2
  %v428 = vadd.f32 %v426, %v427
  %v429 = vrot.slane %v428, 1
  %v430 = vadd.f32 %v428, %v429
  %v431 = vsel %vm311, %v296, 0.0
  %v432 = vrot.slane %v431, 4
  %v433 = vadd.f32 %v431, %v432
  %v434 = vrot.slane %v433, 2
  %v435 = vadd.f32 %v433, %v434
  %v436 = vrot.slane %v435, 1
  %v437 = vadd.f32 %v435, %v436
  %v438 = vsel %vm311, %v297, 0.0
  %v439 = vrot.slane %v438, 4
  %v440 = vadd.f32 %v438, %v439
  %v441 = vrot.slane %v440, 2
  %v442 = vadd.f32 %v440, %v441
  %v443 = vrot.slane %v442, 1
  %v444 = vadd.f32 %v442, %v443
  %v445 = vsel %vm311, %v298, 0.0
  %v446 = vrot.slane %v445, 4
  %v447 = vadd.f32 %v445, %v446
  %v448 = vrot.slane %v447, 2
  %v449 = vadd.f32 %v447, %v448
  %v450 = vrot.slane %v449, 1
  %v451 = vadd.f32 %v449, %v450
  %v452 = vsel %vm311, %v299, 0.0
  %v453 = vrot.slane %v452, 4
  %v454 = vadd.f32 %v452, %v453
  %v455 = vrot.slane %v454, 2
  %v456 = vadd.f32 %v454, %v455
  %v457 = vrot.slane %v456, 1
  %v458 = vadd.f32 %v456, %v457
  %v459 = vsel %vm311, %v300, 0.0
  %v460 = vrot.slane %v459, 4
  %v461 = vadd.f32 %v459, %v460
  %v462 = vrot.slane %v461, 2
  %v463 = vadd.f32 %v461, %v462
  %v464 = vrot.slane %v463, 1
  %v465 = vadd.f32 %v463, %v464
  %v466 = vsel %vm311, %v301, 0.0
  %v467 = vrot.slane %v466, 4
  %v468 = vadd.f32 %v466, %v467
  %v469 = vrot.slane %v468, 2
  %v470 = vadd.f32 %v468, %v469
  %v471 = vrot.slane %v470, 1
  %v472 = vadd.f32 %v470, %v471
  %v473 = vsel %vm311, %v302, 0.0
  %v474 = vrot.slane %v473, 4
  %v475 = vadd.f32 %v473, %v474
  %v476 = vrot.slane %v475, 2
  %v477 = vadd.f32 %v475, %v476
  %v478 = vrot.slane %v477, 1
  %v479 = vadd.f32 %v477, %v478
  %v480 = vsel %vm311, %v303, 0.0
  %v481 = vrot.slane %v480, 4
  %v482 = vadd.f32 %v480, %v481
  %v483 = vrot.slane %v482, 2
  %v484 = vadd.f32 %v482, %v483
  %v485 = vrot.slane %v484, 1
  %v486 = vadd.f32 %v484, %v485
  %v487 = vsel %vm311, %v304, 0.0
  %v488 = vrot.slane %v487, 4
  %v489 = vadd.f32 %v487, %v488
  %v490 = vrot.slane %v489, 2
  %v491 = vadd.f32 %v489, %v490
  %v492 = vrot.slane %v491, 1
  %v493 = vadd.f32 %v491, %v492
  %v494 = vsel %vm311, %v305, 0.0
  %v495 = vrot.slane %v494, 4
  %v496 = vadd.f32 %v494, %v495
  %v497 = vrot.slane %v496, 2
  %v498 = vadd.f32 %v496, %v497
  %v499 = vrot.slane %v498, 1
  %v500 = vadd.f32 %v498, %v499
  %v501 = vsel %vm311, %v306, 0.0
  %v502 = vrot.slane %v501, 4
  %v503 = vadd.f32 %v501, %v502
  %v504 = vrot.slane %v503, 2
  %v505 = vadd.f32 %v503, %v504
  %v506 = vrot.slane %v505, 1
  %v507 = vadd.f32 %v505, %v506
  %v508 = vsel %vm311, %v307, 0.0
  %v509 = vrot.slane %v508, 4
  %v510 = vadd.f32 %v508, %v509
  %v511 = vrot.slane %v510, 2
  %v512 = vadd.f32 %v510, %v511
  %v513 = vrot.slane %v512, 1
  %v514 = vadd.f32 %v512, %v513
  %v515 = vsel %vm311, %v308, 0.0
  %v516 = vrot.slane %v515, 4
  %v517 = vadd.f32 %v515, %v516
  %v518 = vrot.slane %v517, 2
  %v519 = vadd.f32 %v517, %v518
  %v520 = vrot.slane %v519, 1
  %v521 = vadd.f32 %v519, %v520
  %v522 = vsel %vm311, %v309, 0.0
  %v523 = vrot.slane %v522, 4
  %v524 = vadd.f32 %v522, %v523
  %v525 = vrot.slane %v524, 2
  %v526 = vadd.f32 %v524, %v525
  %v527 = vrot.slane %v526, 1
  %v528 = vadd.f32 %v526, %v527
  %v529 = vsel %vm311, %v310, 0.0
  %v530 = vrot.slane %v529, 4
  %v531 = vadd.f32 %v529, %v530
  %v532 = vrot.slane %v531, 2
  %v533 = vadd.f32 %v531, %v532
  %v534 = vrot.slane %v533, 1
  %v535 = vadd.f32 %v533, %v534
  %v536 = vld [vmem:[%s4] sm:$0xff]
  %vm569 = vcmask 1041409
  %v570 = vsel %vm569, %v325, %v318
  %vm571 = vcmask 1042434
  %v572 = vsel %vm571, %v332, %v570
  %vm573 = vcmask 1043459
  %v574 = vsel %vm573, %v339, %v572
  %vm575 = vcmask 1044484
  %v576 = vsel %vm575, %v346, %v574
  %vm577 = vcmask 1045509
  %v578 = vsel %vm577, %v353, %v576
  %vm579 = vcmask 1046534
  %v580 = vsel %vm579, %v360, %v578
  %vm581 = vcmask 1047559
  %v582 = vsel %vm581, %v367, %v580
  %v583 = vsel %vm569, %v381, %v374
  %v584 = vsel %vm571, %v388, %v583
  %v585 = vsel %vm573, %v395, %v584
  %v586 = vsel %vm575, %v402, %v585
  %v587 = vsel %vm577, %v409, %v586
  %v588 = vsel %vm579, %v416, %v587
  %v589 = vsel %vm581, %v423, %v588
  %v590 = vsel %vm569, %v437, %v430
  %v591 = vsel %vm571, %v444, %v590
  %v592 = vsel %vm573, %v451, %v591
  %v593 = vsel %vm575, %v458, %v592
  %v594 = vsel %vm577, %v465, %v593
  %v595 = vsel %vm579, %v472, %v594
  %v596 = vsel %vm581, %v479, %v595
  %v597 = vsel %vm569, %v493, %v486
  %v598 = vsel %vm571, %v500, %v597
  %v599 = vsel %vm573, %v507, %v598
  %v600 = vsel %vm575, %v514, %v599
  %v601 = vsel %vm577, %v521, %v600
  %v602 = vsel %vm579, %v528, %v601
  %v603 = vsel %vm581, %v535, %v602
  %vm604 = vcmask 64512
  %v605 = vsel %vm604, %v582, 0
  %v607 = vsel %vm604, %v589, 0
  %v609 = vsel %vm604, %v596, 0
  %v611 = vsel %vm604, %v603, 0
  %613 = vmatprep.subr.mxu0 0.0
  %614 = vmatpush1.msra.mxu0 %v536
  %615 = vmatprep.subr.mxu0 0.0
  %616 = vmatpush1.msra.mxu0 0.0
  %617 = vmatprep.subr.mxu0 0.0
  %618 = vmatpush1.msra.mxu0 0.0
  %619 = vmatprep.subr.mxu0 0.0
  %620 = vmatpush1.msra.mxu0 0.0
  %621 = vmatprep.subr.mxu0 0.0
  %622 = vmatpush1.msra.mxu0 0.0
  %623 = vmatprep.subr.mxu0 0.0
  %624 = vmatpush1.msra.mxu0 0.0
  %625 = vmatprep.subr.mxu0 0.0
  %626 = vmatpush1.msra.mxu0 0.0
  %627 = vmatprep.subr.mxu0 0.0
  %628 = vmatpush1.msra.mxu0 0.0
  %629 = vmatprep.subr.mxu0 0.0
  %630 = vmatpush1.msra.mxu0 0.0
  %631 = vmatprep.subr.mxu0 0.0
  %632 = vmatpush1.msra.mxu0 0.0
  %633 = vmatprep.subr.mxu0 0.0
  %634 = vmatpush1.msra.mxu0 0.0
  %635 = vmatprep.subr.mxu0 0.0
  %636 = vmatpush1.msra.mxu0 0.0
  %637 = vmatprep.subr.mxu0 0.0
  %638 = vmatpush1.msra.mxu0 0.0
  %639 = vmatprep.subr.mxu0 0.0
  %640 = vmatpush1.msra.mxu0 0.0
  %641 = vmatprep.subr.mxu0 0.0
  %642 = vmatpush1.msra.mxu0 0.0
  %643 = vmatprep.subr.mxu0 0.0
  %644 = vmatpush1.msra.mxu0 0.0
  %645 = vmatprep.subr.mxu0 0.0
  %646 = vmatpush1.msra.mxu0 0.0
  %647 = vmatprep.subr.mxu0 0.0
  %648 = vmatpush1.msra.mxu0 0.0
  %649 = vmatprep.subr.mxu0 0.0
  %650 = vmatpush1.msra.mxu0 0.0
  %651 = vmatprep.subr.mxu0 0.0
  %652 = vmatpush1.msra.mxu0 0.0
  %653 = vmatprep.subr.mxu0 0.0
  %654 = vmatpush1.msra.mxu0 0.0
  %655 = vmatprep.subr.mxu0 0.0
  %656 = vmatpush1.msra.mxu0 0.0
  %657 = vmatprep.subr.mxu0 0.0
  %658 = vmatpush1.msra.mxu0 0.0
  %659 = vmatprep.subr.mxu0 0.0
  %660 = vmatpush1.msra.mxu0 0.0
  %661 = vmatprep.subr.mxu0 0.0
  %662 = vmatpush1.msra.mxu0 0.0
  %663 = vmatprep.subr.mxu0 0.0
  %664 = vmatpush1.msra.mxu0 0.0
  %665 = vmatprep.subr.mxu0 0.0
  %666 = vmatpush1.msra.mxu0 0.0
  %667 = vmatprep.subr.mxu0 0.0
  %668 = vmatpush1.msra.mxu0 0.0
  %669 = vmatprep.subr.mxu0 0.0
  %670 = vmatpush1.msra.mxu0 0.0
  %671 = vmatprep.subr.mxu0 0.0
  %672 = vmatpush1.msra.mxu0 0.0
  %673 = vmatprep.subr.mxu0 0.0
  %674 = vmatpush1.msra.mxu0 0.0
  %675 = vmatprep.subr.mxu0 0.0
  %676 = vmatpush1.msra.mxu0 0.0
  %677 = vmatprep.mubr.f32.mxu0 0.0
  %678 = vmatmul.mubr.f32.gmra.mrb[0].mxu0 %v605
  %v679 = vpop.f32.mrb[0].mxu0
  %v680 = vadd.f32 0.0, %v679
  %v681 = vpop.f32.mrb[0].mxu0
  %682 = vmatprep.mubr.f32.mxu0 0.0
  %683 = vmatmul.mubr.f32.gmra.mrb[0].mxu0 %v607
  %v684 = vpop.f32.mrb[0].mxu0
  %v685 = vadd.f32 0.0, %v684
  %v686 = vpop.f32.mrb[0].mxu0
  %687 = vmatprep.mubr.f32.mxu0 0.0
  %688 = vmatmul.mubr.f32.gmra.mrb[0].mxu0 %v609
  %v689 = vpop.f32.mrb[0].mxu0
  %v690 = vadd.f32 0.0, %v689
  %v691 = vpop.f32.mrb[0].mxu0
  %692 = vmatprep.mubr.f32.mxu0 0.0
  %693 = vmatmul.mubr.f32.gmra.mrb[0].mxu0 %v611
  %v694 = vpop.f32.mrb[0].mxu0
  %v695 = vadd.f32 0.0, %v694
  %v696 = vpop.f32.mrb[0].mxu0
  %697 = vdwg.mxu0
  %v730 = vsel %vm569, %v66, %v59
  %v731 = vsel %vm571, %v73, %v730
  %v732 = vsel %vm573, %v80, %v731
  %v733 = vsel %vm575, %v87, %v732
  %v734 = vsel %vm577, %v94, %v733
  %v735 = vsel %vm579, %v101, %v734
  %v736 = vsel %vm581, %v108, %v735
  %v737 = vsel %vm569, %v122, %v115
  %v738 = vsel %vm571, %v129, %v737
  %v739 = vsel %vm573, %v136, %v738
  %v740 = vsel %vm575, %v143, %v739
  %v741 = vsel %vm577, %v150, %v740
  %v742 = vsel %vm579, %v157, %v741
  %v743 = vsel %vm581, %v164, %v742
  %v744 = vsel %vm569, %v178, %v171
  %v745 = vsel %vm571, %v185, %v744
  %v746 = vsel %vm573, %v192, %v745
  %v747 = vsel %vm575, %v199, %v746
  %v748 = vsel %vm577, %v206, %v747
  %v749 = vsel %vm579, %v213, %v748
  %v750 = vsel %vm581, %v220, %v749
  %v751 = vsel %vm569, %v234, %v227
  %v752 = vsel %vm571, %v241, %v751
  %v753 = vsel %vm573, %v248, %v752
  %v754 = vsel %vm575, %v255, %v753
  %v755 = vsel %vm577, %v262, %v754
  %v756 = vsel %vm579, %v269, %v755
  %v757 = vsel %vm581, %v276, %v756
  %vm758 = vcmask 130048
  %v759 = vsel %vm758, %v736, 0
  %v761 = vsel %vm758, %v743, 0
  %v763 = vsel %vm758, %v750, 0
  %v765 = vsel %vm758, %v757, 0
  %767 = vmatprep.subr.mxu0 0.0
  %768 = vmatpush1.msra.mxu0 %v277
  %769 = vmatprep.subr.mxu0 0.0
  %770 = vmatpush1.msra.mxu0 %v278
  %771 = vmatprep.subr.mxu0 0.0
  %772 = vmatpush1.msra.mxu0 0.0
  %773 = vmatprep.subr.mxu0 0.0
  %774 = vmatpush1.msra.mxu0 0.0
  %775 = vmatprep.subr.mxu0 0.0
  %776 = vmatpush1.msra.mxu0 0.0
  %777 = vmatprep.subr.mxu0 0.0
  %778 = vmatpush1.msra.mxu0 0.0
  %779 = vmatprep.subr.mxu0 0.0
  %780 = vmatpush1.msra.mxu0 0.0
  %781 = vmatprep.subr.mxu0 0.0
  %782 = vmatpush1.msra.mxu0 0.0
  %783 = vmatprep.subr.mxu0 0.0
  %784 = vmatpush1.msra.mxu0 0.0
  %785 = vmatprep.subr.mxu0 0.0
  %786 = vmatpush1.msra.mxu0 0.0
  %787 = vmatprep.subr.mxu0 0.0
  %788 = vmatpush1.msra.mxu0 0.0
  %789 = vmatprep.subr.mxu0 0.0
  %790 = vmatpush1.msra.mxu0 0.0
  %791 = vmatprep.subr.mxu0 0.0
  %792 = vmatpush1.msra.mxu0 0.0
  %793 = vmatprep.subr.mxu0 0.0
  %794 = vmatpush1.msra.mxu0 0.0
  %795 = vmatprep.subr.mxu0 0.0
  %796 = vmatpush1.msra.mxu0 0.0
  %797 = vmatprep.subr.mxu0 0.0
  %798 = vmatpush1.msra.mxu0 0.0
  %799 = vmatprep.subr.mxu0 0.0
  %800 = vmatpush1.msra.mxu0 0.0
  %801 = vmatprep.subr.mxu0 0.0
  %802 = vmatpush1.msra.mxu0 0.0
  %803 = vmatprep.subr.mxu0 0.0
  %804 = vmatpush1.msra.mxu0 0.0
  %805 = vmatprep.subr.mxu0 0.0
  %806 = vmatpush1.msra.mxu0 0.0
  %807 = vmatprep.subr.mxu0 0.0
  %808 = vmatpush1.msra.mxu0 0.0
  %809 = vmatprep.subr.mxu0 0.0
  %810 = vmatpush1.msra.mxu0 0.0
  %811 = vmatprep.subr.mxu0 0.0
  %812 = vmatpush1.msra.mxu0 0.0
  %813 = vmatprep.subr.mxu0 0.0
  %814 = vmatpush1.msra.mxu0 0.0
  %815 = vmatprep.subr.mxu0 0.0
  %816 = vmatpush1.msra.mxu0 0.0
  %817 = vmatprep.subr.mxu0 0.0
  %818 = vmatpush1.msra.mxu0 0.0
  %819 = vmatprep.subr.mxu0 0.0
  %820 = vmatpush1.msra.mxu0 0.0
  %821 = vmatprep.subr.mxu0 0.0
  %822 = vmatpush1.msra.mxu0 0.0
  %823 = vmatprep.subr.mxu0 0.0
  %824 = vmatpush1.msra.mxu0 0.0
  %825 = vmatprep.subr.mxu0 0.0
  %826 = vmatpush1.msra.mxu0 0.0
  %827 = vmatprep.subr.mxu0 0.0
  %828 = vmatpush1.msra.mxu0 0.0
  %829 = vmatprep.subr.mxu0 0.0
  %830 = vmatpush1.msra.mxu0 0.0
  %831 = vmatprep.mubr.f32.mxu0 0.0
  %832 = vmatmul.mubr.f32.gmra.mrb[0].mxu0 %v759
  %v833 = vpop.f32.mrb[0].mxu0
  %v834 = vadd.f32 %v680, %v833
  %v835 = vpop.f32.mrb[0].mxu0
  %836 = vmatprep.mubr.f32.mxu0 0.0
  %837 = vmatmul.mubr.f32.gmra.mrb[0].mxu0 %v761
  %v838 = vpop.f32.mrb[0].mxu0
  %v839 = vadd.f32 %v685, %v838
  %v840 = vpop.f32.mrb[0].mxu0
  %841 = vmatprep.mubr.f32.mxu0 0.0
  %842 = vmatmul.mubr.f32.gmra.mrb[0].mxu0 %v763
  %v843 = vpop.f32.mrb[0].mxu0
  %v844 = vadd.f32 %v690, %v843
  %v845 = vpop.f32.mrb[0].mxu0
  %846 = vmatprep.mubr.f32.mxu0 0.0
  %847 = vmatmul.mubr.f32.gmra.mrb[0].mxu0 %v765
  %v848 = vpop.f32.mrb[0].mxu0
  %v849 = vadd.f32 %v695, %v848
  %v850 = vpop.f32.mrb[0].mxu0
  %851 = vdwg.mxu0
  %v852 = vld [vmem:[%s2] sm:$0x1]
  %v853 = vld [vmem:[%s2 + $0x1] sm:$0x1]
  %v854 = vld [vmem:[%s2 + $0x2] sm:$0x1]
  %v855 = vld [vmem:[%s2 + $0x3] sm:$0x1]
  %v856 = vld [vmem:[%s2 + $0x4] sm:$0x1]
  %v857 = vld [vmem:[%s2 + $0x5] sm:$0x1]
  %v858 = vld [vmem:[%s2 + $0x6] sm:$0x1]
  %v859 = vld [vmem:[%s2 + $0x7] sm:$0x1]
  %v860 = vld [vmem:[%s2 + $0x8] sm:$0x1]
  %v861 = vld [vmem:[%s2 + $0x9] sm:$0x1]
  %v862 = vld [vmem:[%s2 + $0xa] sm:$0x1]
  %v863 = vld [vmem:[%s2 + $0xb] sm:$0x1]
  %v864 = vld [vmem:[%s2 + $0xc] sm:$0x1]
  %v865 = vld [vmem:[%s2 + $0xd] sm:$0x1]
  %v866 = vld [vmem:[%s2 + $0xe] sm:$0x1]
  %v867 = vld [vmem:[%s2 + $0xf] sm:$0x1]
  %v868 = vld [vmem:[%s2 + $0x10] sm:$0x1]
  %v869 = vld [vmem:[%s2 + $0x11] sm:$0x1]
  %v870 = vld [vmem:[%s2 + $0x12] sm:$0x1]
  %v871 = vld [vmem:[%s2 + $0x13] sm:$0x1]
  %v872 = vld [vmem:[%s2 + $0x14] sm:$0x1]
  %v873 = vld [vmem:[%s2 + $0x15] sm:$0x1]
  %v874 = vld [vmem:[%s2 + $0x16] sm:$0x1]
  %v875 = vld [vmem:[%s2 + $0x17] sm:$0x1]
  %v876 = vld [vmem:[%s2 + $0x18] sm:$0x1]
  %v877 = vld [vmem:[%s2 + $0x19] sm:$0x1]
  %v878 = vld [vmem:[%s2 + $0x1a] sm:$0x1]
  %v879 = vld [vmem:[%s2 + $0x1b] sm:$0x1]
  %v880 = vld [vmem:[%s2 + $0x1c] sm:$0x1]
  %v881 = vld [vmem:[%s2 + $0x1d] sm:$0x1]
  %v882 = vld [vmem:[%s2 + $0x1e] sm:$0x1]
  %v883 = vld [vmem:[%s2 + $0x1f] sm:$0x1]
  %v884 = vadd.f32 %v852, 0.0
  %v885 = vadd.f32 %v853, 0.0
  %v886 = vadd.f32 %v854, 0.0
  %v887 = vadd.f32 %v855, 0.0
  %v888 = vadd.f32 %v856, 0.0
  %v889 = vadd.f32 %v857, 0.0
  %v890 = vadd.f32 %v858, 0.0
  %v891 = vadd.f32 %v859, 0.0
  %v892 = vadd.f32 %v860, 0.0
  %v893 = vadd.f32 %v861, 0.0
  %v894 = vadd.f32 %v862, 0.0
  %v895 = vadd.f32 %v863, 0.0
  %v896 = vadd.f32 %v864, 0.0
  %v897 = vadd.f32 %v865, 0.0
  %v898 = vadd.f32 %v866, 0.0
  %v899 = vadd.f32 %v867, 0.0
  %v900 = vadd.f32 %v868, 0.0
  %v901 = vadd.f32 %v869, 0.0
  %v902 = vadd.f32 %v870, 0.0
  %v903 = vadd.f32 %v871, 0.0
  %v904 = vadd.f32 %v872, 0.0
  %v905 = vadd.f32 %v873, 0.0
  %v906 = vadd.f32 %v874, 0.0
  %v907 = vadd.f32 %v875, 0.0
  %v908 = vadd.f32 %v876, 0.0
  %v909 = vadd.f32 %v877, 0.0
  %v910 = vadd.f32 %v878, 0.0
  %v911 = vadd.f32 %v879, 0.0
  %v912 = vadd.f32 %v880, 0.0
  %v913 = vadd.f32 %v881, 0.0
  %v914 = vadd.f32 %v882, 0.0
  %v915 = vadd.f32 %v883, 0.0
  %v948 = vcombine.low %v884, %v885
  %v949 = vcombine.low %v886, %v887
  %v950 = vcombine.low %v888, %v889
  %v951 = vcombine.low %v890, %v891
  %v953 = vunpack.c.l.s4 1966171168
  %v954 = vunpack.c.0.s8 %v953
  %v955 = vlaneseq
  %v956 = vshrl.u32 %v955, 7
  %v957 = vsub.s32 %v954, %v956
  %v958 = vrot.slane %v948, %v957
  %v960 = vunpack.c.l.s4 1966171168
  %v961 = vunpack.c.0.s8 %v960
  %v962 = vlaneseq
  %v963 = vshrl.u32 %v962, 7
  %v964 = vsub.s32 %v961, %v963
  %v965 = vrot.slane %v949, %v964
  %v967 = vunpack.c.l.s4 1966171168
  %v968 = vunpack.c.0.s8 %v967
  %v969 = vlaneseq
  %v970 = vshrl.u32 %v969, 7
  %v971 = vsub.s32 %v968, %v970
  %v972 = vrot.slane %v950, %v971
  %v974 = vunpack.c.l.s4 1966171168
  %v975 = vunpack.c.0.s8 %v974
  %v976 = vlaneseq
  %v977 = vshrl.u32 %v976, 7
  %v978 = vsub.s32 %v975, %v977
  %v979 = vrot.slane %v951, %v978
  %v980 = vcombine.low %v958, %v965
  %v981 = vcombine.low %v972, %v979
  %v983 = vunpack.c.l.s4 1966171168
  %v984 = vunpack.c.0.s8 %v983
  %v985 = vlaneseq
  %v986 = vshrl.u32 %v985, 7
  %v987 = vsub.s32 %v984, %v986
  %v988 = vrot.slane %v980, %v987
  %v990 = vunpack.c.l.s4 1966171168
  %v991 = vunpack.c.0.s8 %v990
  %v992 = vlaneseq
  %v993 = vshrl.u32 %v992, 7
  %v994 = vsub.s32 %v991, %v993
  %v995 = vrot.slane %v981, %v994
  %v996 = vcombine.low %v988, %v995
  %v997 = vcombine.low %v892, %v893
  %v998 = vcombine.low %v894, %v895
  %v999 = vcombine.low %v896, %v897
  %v1000 = vcombine.low %v898, %v899
  %v1002 = vunpack.c.l.s4 1966171168
  %v1003 = vunpack.c.0.s8 %v1002
  %v1004 = vlaneseq
  %v1005 = vshrl.u32 %v1004, 7
  %v1006 = vsub.s32 %v1003, %v1005
  %v1007 = vrot.slane %v997, %v1006
  %v1009 = vunpack.c.l.s4 1966171168
  %v1010 = vunpack.c.0.s8 %v1009
  %v1011 = vlaneseq
  %v1012 = vshrl.u32 %v1011, 7
  %v1013 = vsub.s32 %v1010, %v1012
  %v1014 = vrot.slane %v998, %v1013
  %v1016 = vunpack.c.l.s4 1966171168
  %v1017 = vunpack.c.0.s8 %v1016
  %v1018 = vlaneseq
  %v1019 = vshrl.u32 %v1018, 7
  %v1020 = vsub.s32 %v1017, %v1019
  %v1021 = vrot.slane %v999, %v1020
  %v1023 = vunpack.c.l.s4 1966171168
  %v1024 = vunpack.c.0.s8 %v1023
  %v1025 = vlaneseq
  %v1026 = vshrl.u32 %v1025, 7
  %v1027 = vsub.s32 %v1024, %v1026
  %v1028 = vrot.slane %v1000, %v1027
  %v1029 = vcombine.low %v1007, %v1014
  %v1030 = vcombine.low %v1021, %v1028
  %v1032 = vunpack.c.l.s4 1966171168
  %v1033 = vunpack.c.0.s8 %v1032
  %v1034 = vlaneseq
  %v1035 = vshrl.u32 %v1034, 7
  %v1036 = vsub.s32 %v1033, %v1035
  %v1037 = vrot.slane %v1029, %v1036
  %v1039 = vunpack.c.l.s4 1966171168
  %v1040 = vunpack.c.0.s8 %v1039
  %v1041 = vlaneseq
  %v1042 = vshrl.u32 %v1041, 7
  %v1043 = vsub.s32 %v1040, %v1042
  %v1044 = vrot.slane %v1030, %v1043
  %v1045 = vcombine.low %v1037, %v1044
  %v1046 = vcombine.low %v900, %v901
  %v1047 = vcombine.low %v902, %v903
  %v1048 = vcombine.low %v904, %v905
  %v1049 = vcombine.low %v906, %v907
  %v1051 = vunpack.c.l.s4 1966171168
  %v1052 = vunpack.c.0.s8 %v1051
  %v1053 = vlaneseq
  %v1054 = vshrl.u32 %v1053, 7
  %v1055 = vsub.s32 %v1052, %v1054
  %v1056 = vrot.slane %v1046, %v1055
  %v1058 = vunpack.c.l.s4 1966171168
  %v1059 = vunpack.c.0.s8 %v1058
  %v1060 = vlaneseq
  %v1061 = vshrl.u32 %v1060, 7
  %v1062 = vsub.s32 %v1059, %v1061
  %v1063 = vrot.slane %v1047, %v1062
  %v1065 = vunpack.c.l.s4 1966171168
  %v1066 = vunpack.c.0.s8 %v1065
  %v1067 = vlaneseq
  %v1068 = vshrl.u32 %v1067, 7
  %v1069 = vsub.s32 %v1066, %v1068
  %v1070 = vrot.slane %v1048, %v1069
  %v1072 = vunpack.c.l.s4 1966171168
  %v1073 = vunpack.c.0.s8 %v1072
  %v1074 = vlaneseq
  %v1075 = vshrl.u32 %v1074, 7
  %v1076 = vsub.s32 %v1073, %v1075
  %v1077 = vrot.slane %v1049, %v1076
  %v1078 = vcombine.low %v1056, %v1063
  %v1079 = vcombine.low %v1070, %v1077
  %v1081 = vunpack.c.l.s4 1966171168
  %v1082 = vunpack.c.0.s8 %v1081
  %v1083 = vlaneseq
  %v1084 = vshrl.u32 %v1083, 7
  %v1085 = vsub.s32 %v1082, %v1084
  %v1086 = vrot.slane %v1078, %v1085
  %v1088 = vunpack.c.l.s4 1966171168
  %v1089 = vunpack.c.0.s8 %v1088
  %v1090 = vlaneseq
  %v1091 = vshrl.u32 %v1090, 7
  %v1092 = vsub.s32 %v1089, %v1091
  %v1093 = vrot.slane %v1079, %v1092
  %v1094 = vcombine.low %v1086, %v1093
  %v1095 = vcombine.low %v908, %v909
  %v1096 = vcombine.low %v910, %v911
  %v1097 = vcombine.low %v912, %v913
  %v1098 = vcombine.low %v914, %v915
  %v1100 = vunpack.c.l.s4 1966171168
  %v1101 = vunpack.c.0.s8 %v1100
  %v1102 = vlaneseq
  %v1103 = vshrl.u32 %v1102, 7
  %v1104 = vsub.s32 %v1101, %v1103
  %v1105 = vrot.slane %v1095, %v1104
  %v1107 = vunpack.c.l.s4 1966171168
  %v1108 = vunpack.c.0.s8 %v1107
  %v1109 = vlaneseq
  %v1110 = vshrl.u32 %v1109, 7
  %v1111 = vsub.s32 %v1108, %v1110
  %v1112 = vrot.slane %v1096, %v1111
  %v1114 = vunpack.c.l.s4 1966171168
  %v1115 = vunpack.c.0.s8 %v1114
  %v1116 = vlaneseq
  %v1117 = vshrl.u32 %v1116, 7
  %v1118 = vsub.s32 %v1115, %v1117
  %v1119 = vrot.slane %v1097, %v1118
  %v1121 = vunpack.c.l.s4 1966171168
  %v1122 = vunpack.c.0.s8 %v1121
  %v1123 = vlaneseq
  %v1124 = vshrl.u32 %v1123, 7
  %v1125 = vsub.s32 %v1122, %v1124
  %v1126 = vrot.slane %v1098, %v1125
  %v1127 = vcombine.low %v1105, %v1112
  %v1128 = vcombine.low %v1119, %v1126
  %v1130 = vunpack.c.l.s4 1966171168
  %v1131 = vunpack.c.0.s8 %v1130
  %v1132 = vlaneseq
  %v1133 = vshrl.u32 %v1132, 7
  %v1134 = vsub.s32 %v1131, %v1133
  %v1135 = vrot.slane %v1127, %v1134
  %v1137 = vunpack.c.l.s4 1966171168
  %v1138 = vunpack.c.0.s8 %v1137
  %v1139 = vlaneseq
  %v1140 = vshrl.u32 %v1139, 7
  %v1141 = vsub.s32 %v1138, %v1140
  %v1142 = vrot.slane %v1128, %v1141
  %v1143 = vcombine.low %v1135, %v1142
  %v1148 = vadd.f32 %v834, %v996
  %v1149 = vadd.f32 %v839, %v1045
  %v1150 = vadd.f32 %v844, %v1094
  %v1151 = vadd.f32 %v849, %v1143
  %vm1152 = vcmask 31744
  %1153 = vst.msk [vmem:[%s5] sm:$0xff] %vm1152, %v1148
  %1154 = vst.msk [vmem:[%s5 + $0x8] sm:$0xff] %vm1152, %v1149
  %1155 = vst.msk [vmem:[%s5 + $0x10] sm:$0xff] %vm1152, %v1150
  %1156 = vst.msk [vmem:[%s5 + $0x18] sm:$0xff] %vm1152, %v1151
  // Predicated region
  $region22: #{tpu_custom_call.1} parent=0 // pred_check
    _
  $region23: #{tpu_custom_call.1} parent=0 // pred_check_branch
    %1158 = sbr.rel (0) target = $region25
  $region24: #{tpu_custom_call.1} parent=0 // pred_region
    _
  $region25: #{tpu_custom_call.1} parent=0 // pred_fallthru
    _
  // Predicated region
  $region26: #{tpu_custom_call.1} parent=0 // pred_check
    _
  $region27: #{tpu_custom_call.1} parent=0 // pred_check_branch
    %1160 = sbr.rel (0) target = $region29
  $region28: #{tpu_custom_call.1} parent=0 // pred_region
    _
  $region29: #{tpu_custom_call.1} parent=0 // pred_fallthru
    _

</llo_original>
